<compile_context>
chip_gen: v6e
topology: v6e:2x2x1
jax: 0.10.0
libtpu: 0.0.40
codegen_flags: <defaults>
</compile_context>

<pallas_src>
import functools

import jax
import jax.numpy as jnp
from jax.experimental import pallas as pl
from jax.experimental.pallas import tpu as pltpu

EPS = 1e-5


def _bn_affine(y, gamma, beta, relu):
    """Training-mode BatchNorm1d over axis 0 (the N*L rows), fused one-pass form.

    var = max(E[y^2] - mean^2, 0) (biased, clamped against cancellation),
    scale = gamma * rsqrt(var + eps), shift = beta - mean * scale
    ->  y * scale + shift   (2 VPU ops / element, rsqrt on the EUP).
    Zero-padded channels (gamma = beta = 0) map exactly to 0.
    """
    inv_m = 1.0 / y.shape[0]
    mean = jnp.sum(y, axis=0, keepdims=True) * inv_m             # (1, C)
    meansq = jnp.sum(y * y, axis=0, keepdims=True) * inv_m       # (1, C)
    var = jnp.maximum(meansq - mean * mean, 0.0)
    scale = gamma * jax.lax.rsqrt(var + EPS)                     # EUP (free slot)
    shift = beta - mean * scale
    out = y * scale + shift
    return jnp.maximum(out, 0.0) if relu else out


def _block_kernel(x_ref, w1_ref, w2_ref, w3_ref, bn_ref, o_ref, *, L):
    x = x_ref[...]                                   # (NL, Cpad) f32 (residual)
    NL, C = x.shape                                  # C == 128-lane-padded width

    # Sequence-boundary masks, one lane column wide (broadcast over the taps).
    row = jax.lax.broadcasted_iota(jnp.int32, (NL, 1), 0)
    if (L & (L - 1)) == 0:
        l_pos = row & (L - 1)
    else:
        l_pos = row % L                              # TODO(synk): avoid for odd L at scale
    not_first = l_pos != 0
    not_last = l_pos != (L - 1)

    # ---- conv1 (1x1) + bn1 + relu  (num_layers > 34 path) ----
    # Conv bias dropped: a per-channel bias followed by training-mode BN is a
    # mathematical no-op (it shifts the mean BN subtracts; variance unchanged).
    h = jnp.dot(x.astype(jnp.bfloat16), w1_ref[...],
                preferred_element_type=jnp.float32)              # (NL, C)
    h = _bn_affine(h, bn_ref[0:1, :], bn_ref[1:2, :], relu=True)

    # ---- conv2 (k=3, stride=1, pad=1) + bn2 + relu ----
    # Single fused MXU call against the 3x-wide weight; each 128-lane tap slice
    # is a free static view, aligned to its output row with a sublane roll and
    # zeroed at sequence boundaries by the (NL, 1) masks.
    p = jnp.dot(h.astype(jnp.bfloat16), w2_ref[...],
                preferred_element_type=jnp.float32)              # (NL, 3*C)
    tap_prev = jnp.where(not_first, pltpu.roll(p[:, 0:C], 1, 0), 0.0)
    tap_cur = p[:, C:2 * C]
    tap_next = jnp.where(not_last, pltpu.roll(p[:, 2 * C:3 * C], NL - 1, 0), 0.0)
    y = tap_prev + tap_cur + tap_next
    y = _bn_affine(y, bn_ref[2:3, :], bn_ref[3:4, :], relu=True)

    # ---- conv3 (1x1) + bn3 ----
    z = jnp.dot(y.astype(jnp.bfloat16), w3_ref[...],
                preferred_element_type=jnp.float32)              # (NL, C)
    z = _bn_affine(z, bn_ref[4:5, :], bn_ref[5:6, :], relu=False)

    # ---- residual add (identity_downsample is None) + final relu ----
    o_ref[...] = jnp.maximum(z + x, 0.0).astype(o_ref.dtype)


def prepare_block_params(params, cpad=128):
    """One-time parameter prep (hoisted out of the per-call wrapper).

    Zero-pads every channel dim to `cpad` lanes, pre-casts matmul weights to
    bf16, and packs all BN gamma/beta rows into one (8, cpad) f32 array (single
    DMA).  Conv biases are accepted but unused (inert before training-mode BN).
    """
    (w1, _b1, g1, be1, w2, _b2, g2, be2, w3, _b3, g3, be3) = params
    cin, cmid = w1.shape
    cout = w3.shape[1]
    assert max(cin, cmid, cout) <= cpad

    def pad2(w, r, c):
        return jnp.pad(w, ((0, cpad - r), (0, cpad - c)))

    w1p = pad2(w1, cin, cmid).astype(jnp.bfloat16)                      # (cpad, cpad)
    # Wide conv2 weight: columns [k*cpad:(k+1)*cpad] == padded w2[k] -> tap
    # slices in the kernel start on 128-lane boundaries (free views).
    w2p = jnp.concatenate([pad2(w2[k], cmid, cmid) for k in range(3)],
                          axis=1).astype(jnp.bfloat16)                  # (cpad, 3*cpad)
    w3p = pad2(w3, cmid, cout).astype(jnp.bfloat16)                     # (cpad, cpad)

    def pad_c(v):
        v = v.reshape(-1)
        return jnp.pad(v, (0, cpad - v.shape[0]))

    rows = [pad_c(g1), pad_c(be1), pad_c(g2), pad_c(be2), pad_c(g3), pad_c(be3),
            jnp.zeros((cpad,), jnp.float32), jnp.zeros((cpad,), jnp.float32)]
    bn_packed = jnp.stack(rows).astype(jnp.float32)                     # (8, cpad)
    return (w1p, w2p, w3p, bn_packed)


def _vmem_limit_bytes(nl, cpad):
    f32, bf16 = 4, 2
    resident = (
        2 * nl * cpad * f32                             # x in + out block
        + (2 * cpad * cpad + 3 * cpad * cpad) * bf16    # w1, w3, wide w2
        + 8 * cpad * f32                                # packed BN params
        + 7 * nl * cpad * f32                           # h, p (3 taps), y, z temporaries
    )
    # 2x headroom for compiler scratch / buffering, 16 MiB floor, capped under
    # the smallest per-TC VMEM (v7x: 64 MiB) so the same arithmetic holds there.
    return int(min(max(2 * resident, 16 << 20), 60 << 20))


def resnet_block_forward(x, prepared):
    """Fused bottleneck Block forward (num_layers=50, stride=1, no downsample).

    x: (N, L, Cin) float32, channels-last.
    prepared: output of prepare_block_params (lane-padded bf16 weights + packed
      BN params), built once outside the per-call path.
    """
    w1p, w2p, w3p, bn_packed = prepared
    cpad = w1p.shape[0]
    N, L, Cin = x.shape
    Cout = Cin  # identity residual requires Cout == Cin
    NL = N * L

    # Lane-pad the activations; padded channels stay exactly zero end-to-end.
    x2d = jnp.pad(x.reshape(NL, Cin), ((0, 0), (0, cpad - Cin)))

    # TODO(synk): when N*L grows beyond a single resident block, add an N-tiled
    # "parallel" row grid (BlockSpec auto-pipelining, row tile >= 512 and a
    # multiple of 256 for the v6e/v7x MXU) with a two-pass BN (per-channel
    # sum/sum-sq stats pass + fused apply pass); keep full L inside each tile so
    # the k=3 sublane roll never crosses a tile boundary.
    vmem = pl.BlockSpec(memory_space=pltpu.MemorySpace.VMEM)
    out2d = pl.pallas_call(
        functools.partial(_block_kernel, L=L),
        out_shape=jax.ShapeDtypeStruct((NL, cpad), x.dtype),
        in_specs=[vmem] * 5,
        out_specs=vmem,
        compiler_params=pltpu.CompilerParams(
            vmem_limit_bytes=_vmem_limit_bytes(NL, cpad)),
    )(x2d, w1p, w2p, w3p, bn_packed)
    return out2d[:, :Cout].reshape(N, L, Cout)


def reference_forward(x, params, matmul_dtype=jnp.float32):
    """Pure-JAX reference (same channels-last layout), exact module semantics.

    With matmul_dtype=bf16 it mirrors the kernel's MXU-operand precision while
    keeping the conv biases (which the kernel drops) -- this also verifies that
    bias-before-training-BN is inert and that the lane padding is exact.
    """
    (w1, b1, g1, be1, w2, b2, g2, be2, w3, b3, g3, be3) = params
    _, L, _ = x.shape

    def bn(y, gamma, beta):
        mean = jnp.mean(y, axis=(0, 1), keepdims=True)
        var = jnp.mean((y - mean) ** 2, axis=(0, 1), keepdims=True)
        return (y - mean) * jax.lax.rsqrt(var + EPS) * gamma + beta

    def mm(a, w):
        return jnp.einsum("nlc,cd->nld", a.astype(matmul_dtype),
                          w.astype(matmul_dtype),
                          preferred_element_type=jnp.float32)

    h = mm(x, w1) + b1
    h = jax.nn.relu(bn(h, g1, be1))
    hp = jnp.pad(h, ((0, 0), (1, 1), (0, 0)))
    y = (mm(hp[:, 0:L, :], w2[0]) + mm(hp[:, 1:L + 1, :], w2[1])
         + mm(hp[:, 2:L + 2, :], w2[2]) + b2)
    y = jax.nn.relu(bn(y, g2, be2))
    z = mm(y, w3) + b3
    z = bn(z, g3, be3)
    return jax.nn.relu(z + x)


if __name__ == "__main__":
    # Block(num_layers=50, in_channels=32, out_channels=8, stride=1)
    N, L = 2, 16
    Cin, Cmid, expansion = 32, 8, 4
    Cout = Cmid * expansion  # == Cin, so the identity residual add is valid
    assert Cout == Cin

    key = jax.random.PRNGKey(0)
    ks = jax.random.split(key, 14)

    x = jax.random.normal(ks[0], (N, L, Cin), jnp.float32)

    w1 = 0.1 * jax.random.normal(ks[1], (Cin, Cmid), jnp.float32)
    b1 = 0.1 * jax.random.normal(ks[2], (Cmid,), jnp.float32)
    g1 = 1.0 + 0.1 * jax.random.normal(ks[3], (Cmid,), jnp.float32)
    be1 = 0.1 * jax.random.normal(ks[4], (Cmid,), jnp.float32)

    w2 = 0.1 * jax.random.normal(ks[5], (3, Cmid, Cmid), jnp.float32)
    b2 = 0.1 * jax.random.normal(ks[6], (Cmid,), jnp.float32)
    g2 = 1.0 + 0.1 * jax.random.normal(ks[7], (Cmid,), jnp.float32)
    be2 = 0.1 * jax.random.normal(ks[8], (Cmid,), jnp.float32)

    w3 = 0.1 * jax.random.normal(ks[9], (Cmid, Cout), jnp.float32)
    b3 = 0.1 * jax.random.normal(ks[10], (Cout,), jnp.float32)
    g3 = 1.0 + 0.1 * jax.random.normal(ks[11], (Cout,), jnp.float32)
    be3 = 0.1 * jax.random.normal(ks[12], (Cout,), jnp.float32)

    params = (w1, b1, g1, be1, w2, b2, g2, be2, w3, b3, g3, be3)

    # One-time prep (hoisted out of the per-call path): lane padding, bf16
    # weight casts, BN-param packing.
    prepared = jax.tree_util.tree_map(jax.block_until_ready,
                                      prepare_block_params(params))

    fwd = jax.jit(resnet_block_forward)
    out = jax.block_until_ready(fwd(x, prepared))
    assert out.shape == (N, L, Cout)

    # (1) Tight check vs a reference using the same bf16 matmul-operand
    #     precision (verifies fused conv2, lane-aligned roll/mask taps, lane
    #     padding exactness, fused one-pass BN, and dropped conv biases).
    ref_bf16 = jax.block_until_ready(
        reference_forward(x, params, matmul_dtype=jnp.bfloat16))
    err1 = float(jnp.max(jnp.abs(out - ref_bf16)))
    assert jnp.allclose(out, ref_bf16, rtol=5e-3, atol=5e-3), (
        "mismatch vs bf16-operand reference, max abs err %e" % err1)

    # (2) Loose check vs exact f32 module semantics (bounds the deliberate bf16
    #     MXU-operand precision loss).
    ref_f32 = jax.block_until_ready(reference_forward(x, params))
    err2 = float(jnp.max(jnp.abs(out - ref_f32)))
    assert jnp.allclose(out, ref_f32, rtol=1e-1, atol=1e-1), (
        "mismatch vs f32 reference, max abs err %e" % err2)

    print("KERNEL_OK")
</pallas_src>

<mosaic_0001>
module attributes {stable_mosaic.version = 11 : i64} {
  func.func @_block_kernel(%arg0: memref<32x128xf32, #tpu.memory_space<vmem>>, %arg1: memref<128x128xbf16, #tpu.memory_space<vmem>>, %arg2: memref<128x384xbf16, #tpu.memory_space<vmem>>, %arg3: memref<128x128xbf16, #tpu.memory_space<vmem>>, %arg4: memref<8x128xf32, #tpu.memory_space<vmem>>, %arg5: memref<32x128xf32, #tpu.memory_space<vmem>>) attributes {dimension_semantics = [], scalar_prefetch = 0 : i64, scratch_operands = 0 : i64, tpu.core_type = #tpu.core_type<tc>} {
    %c0 = arith.constant 0 : index
    %c0_0 = arith.constant 0 : index
    %0 = vector.load %arg0[%c0, %c0_0] : memref<32x128xf32, #tpu.memory_space<vmem>>, vector<32x128xf32>
    %1 = tpu.iota {dimensions = array<i32: 0>} : vector<32x1xi32>
    %c15_i32 = arith.constant 15 : i32
    %2 = vector.broadcast %c15_i32 : i32 to vector<32x1xi32>
    %3 = arith.andi %1, %2 : vector<32x1xi32>
    %c0_i32 = arith.constant 0 : i32
    %4 = vector.broadcast %c0_i32 : i32 to vector<32x1xi32>
    %5 = arith.cmpi ne, %3, %4 : vector<32x1xi32>
    %c15_i32_1 = arith.constant 15 : i32
    %6 = vector.broadcast %c15_i32_1 : i32 to vector<32x1xi32>
    %7 = arith.cmpi ne, %3, %6 : vector<32x1xi32>
    %8 = arith.truncf %0 : vector<32x128xf32> to vector<32x128xbf16>
    %c0_2 = arith.constant 0 : index
    %c0_3 = arith.constant 0 : index
    %9 = vector.load %arg1[%c0_2, %c0_3] : memref<128x128xbf16, #tpu.memory_space<vmem>>, vector<128x128xbf16>
    %cst = arith.constant dense<0.000000e+00> : vector<32x128xf32>
    %10 = tpu.matmul %8, %9, %cst {dimension_numbers = #tpu.dot_dimension_numbers<[1], [0], [0], [1], [0, 0, 1, 1], [], []>} : vector<32x128xbf16>, vector<128x128xbf16>, vector<32x128xf32> -> vector<32x128xf32>
    %c0_4 = arith.constant 0 : index
    %c0_5 = arith.constant 0 : index
    %11 = vector.load %arg4[%c0_4, %c0_5] : memref<8x128xf32, #tpu.memory_space<vmem>>, vector<1x128xf32>
    %c1 = arith.constant 1 : index
    %c0_6 = arith.constant 0 : index
    %12 = vector.load %arg4[%c1, %c0_6] : memref<8x128xf32, #tpu.memory_space<vmem>>, vector<1x128xf32>
    %cst_7 = arith.constant dense<0.000000e+00> : vector<128xf32>
    %13 = vector.multi_reduction <add>, %10, %cst_7 [0] : vector<32x128xf32> to vector<128xf32>
    %14 = vector.shape_cast %13 : vector<128xf32> to vector<1x128xf32>
    %cst_8 = arith.constant 3.125000e-02 : f32
    %15 = vector.broadcast %cst_8 : f32 to vector<1x128xf32>
    %16 = arith.mulf %14, %15 : vector<1x128xf32>
    %17 = arith.mulf %10, %10 : vector<32x128xf32>
    %cst_9 = arith.constant dense<0.000000e+00> : vector<128xf32>
    %18 = vector.multi_reduction <add>, %17, %cst_9 [0] : vector<32x128xf32> to vector<128xf32>
    %19 = vector.shape_cast %18 : vector<128xf32> to vector<1x128xf32>
    %cst_10 = arith.constant 3.125000e-02 : f32
    %20 = vector.broadcast %cst_10 : f32 to vector<1x128xf32>
    %21 = arith.mulf %19, %20 : vector<1x128xf32>
    %22 = arith.mulf %16, %16 : vector<1x128xf32>
    %23 = arith.subf %21, %22 : vector<1x128xf32>
    %cst_11 = arith.constant 0.000000e+00 : f32
    %24 = vector.broadcast %cst_11 : f32 to vector<1x128xf32>
    %25 = arith.maximumf %23, %24 : vector<1x128xf32>
    %cst_12 = arith.constant 9.99999974E-6 : f32
    %26 = vector.broadcast %cst_12 : f32 to vector<1x128xf32>
    %27 = arith.addf %25, %26 : vector<1x128xf32>
    %28 = math.rsqrt %27 : vector<1x128xf32>
    %29 = arith.mulf %11, %28 : vector<1x128xf32>
    %30 = arith.mulf %16, %29 : vector<1x128xf32>
    %31 = arith.subf %12, %30 : vector<1x128xf32>
    %32 = vector.broadcast %29 : vector<1x128xf32> to vector<32x128xf32>
    %33 = arith.mulf %10, %32 : vector<32x128xf32>
    %34 = vector.broadcast %31 : vector<1x128xf32> to vector<32x128xf32>
    %35 = arith.addf %33, %34 : vector<32x128xf32>
    %cst_13 = arith.constant 0.000000e+00 : f32
    %36 = vector.broadcast %cst_13 : f32 to vector<32x128xf32>
    %37 = arith.maximumf %35, %36 : vector<32x128xf32>
    %38 = arith.truncf %37 : vector<32x128xf32> to vector<32x128xbf16>
    %c0_14 = arith.constant 0 : index
    %c0_15 = arith.constant 0 : index
    %39 = vector.load %arg2[%c0_14, %c0_15] : memref<128x384xbf16, #tpu.memory_space<vmem>>, vector<128x384xbf16>
    %cst_16 = arith.constant dense<0.000000e+00> : vector<32x384xf32>
    %40 = tpu.matmul %38, %39, %cst_16 {dimension_numbers = #tpu.dot_dimension_numbers<[1], [0], [0], [1], [0, 0, 1, 1], [], []>} : vector<32x128xbf16>, vector<128x384xbf16>, vector<32x384xf32> -> vector<32x384xf32>
    %41 = vector.extract_strided_slice %40 {offsets = [0, 0], sizes = [32, 128], strides = [1, 1]} : vector<32x384xf32> to vector<32x128xf32>
    %c1_i32 = arith.constant 1 : i32
    %42 = tpu.dynamic_rotate %41 by %c1_i32 dim 0 : vector<32x128xf32>, i32 -> vector<32x128xf32>
    %cst_17 = arith.constant 0.000000e+00 : f32
    %43 = vector.shape_cast %5 : vector<32x1xi1> to vector<32x1xi1>
    %44 = vector.broadcast %43 : vector<32x1xi1> to vector<32x128xi1>
    %45 = vector.broadcast %cst_17 : f32 to vector<32x128xf32>
    %46 = arith.select %44, %42, %45 : vector<32x128xi1>, vector<32x128xf32>
    %47 = vector.extract_strided_slice %40 {offsets = [0, 128], sizes = [32, 128], strides = [1, 1]} : vector<32x384xf32> to vector<32x128xf32>
    %48 = vector.extract_strided_slice %40 {offsets = [0, 256], sizes = [32, 128], strides = [1, 1]} : vector<32x384xf32> to vector<32x128xf32>
    %c31_i32 = arith.constant 31 : i32
    %49 = tpu.dynamic_rotate %48 by %c31_i32 dim 0 : vector<32x128xf32>, i32 -> vector<32x128xf32>
    %cst_18 = arith.constant 0.000000e+00 : f32
    %50 = vector.shape_cast %7 : vector<32x1xi1> to vector<32x1xi1>
    %51 = vector.broadcast %50 : vector<32x1xi1> to vector<32x128xi1>
    %52 = vector.broadcast %cst_18 : f32 to vector<32x128xf32>
    %53 = arith.select %51, %49, %52 : vector<32x128xi1>, vector<32x128xf32>
    %54 = arith.addf %46, %47 : vector<32x128xf32>
    %55 = arith.addf %54, %53 : vector<32x128xf32>
    %c2 = arith.constant 2 : index
    %c0_19 = arith.constant 0 : index
    %56 = vector.load %arg4[%c2, %c0_19] : memref<8x128xf32, #tpu.memory_space<vmem>>, vector<1x128xf32>
    %c3 = arith.constant 3 : index
    %c0_20 = arith.constant 0 : index
    %57 = vector.load %arg4[%c3, %c0_20] : memref<8x128xf32, #tpu.memory_space<vmem>>, vector<1x128xf32>
    %cst_21 = arith.constant dense<0.000000e+00> : vector<128xf32>
    %58 = vector.multi_reduction <add>, %55, %cst_21 [0] : vector<32x128xf32> to vector<128xf32>
    %59 = vector.shape_cast %58 : vector<128xf32> to vector<1x128xf32>
    %cst_22 = arith.constant 3.125000e-02 : f32
    %60 = vector.broadcast %cst_22 : f32 to vector<1x128xf32>
    %61 = arith.mulf %59, %60 : vector<1x128xf32>
    %62 = arith.mulf %55, %55 : vector<32x128xf32>
    %cst_23 = arith.constant dense<0.000000e+00> : vector<128xf32>
    %63 = vector.multi_reduction <add>, %62, %cst_23 [0] : vector<32x128xf32> to vector<128xf32>
    %64 = vector.shape_cast %63 : vector<128xf32> to vector<1x128xf32>
    %cst_24 = arith.constant 3.125000e-02 : f32
    %65 = vector.broadcast %cst_24 : f32 to vector<1x128xf32>
    %66 = arith.mulf %64, %65 : vector<1x128xf32>
    %67 = arith.mulf %61, %61 : vector<1x128xf32>
    %68 = arith.subf %66, %67 : vector<1x128xf32>
    %cst_25 = arith.constant 0.000000e+00 : f32
    %69 = vector.broadcast %cst_25 : f32 to vector<1x128xf32>
    %70 = arith.maximumf %68, %69 : vector<1x128xf32>
    %cst_26 = arith.constant 9.99999974E-6 : f32
    %71 = vector.broadcast %cst_26 : f32 to vector<1x128xf32>
    %72 = arith.addf %70, %71 : vector<1x128xf32>
    %73 = math.rsqrt %72 : vector<1x128xf32>
    %74 = arith.mulf %56, %73 : vector<1x128xf32>
    %75 = arith.mulf %61, %74 : vector<1x128xf32>
    %76 = arith.subf %57, %75 : vector<1x128xf32>
    %77 = vector.broadcast %74 : vector<1x128xf32> to vector<32x128xf32>
    %78 = arith.mulf %55, %77 : vector<32x128xf32>
    %79 = vector.broadcast %76 : vector<1x128xf32> to vector<32x128xf32>
    %80 = arith.addf %78, %79 : vector<32x128xf32>
    %cst_27 = arith.constant 0.000000e+00 : f32
    %81 = vector.broadcast %cst_27 : f32 to vector<32x128xf32>
    %82 = arith.maximumf %80, %81 : vector<32x128xf32>
    %83 = arith.truncf %82 : vector<32x128xf32> to vector<32x128xbf16>
    %c0_28 = arith.constant 0 : index
    %c0_29 = arith.constant 0 : index
    %84 = vector.load %arg3[%c0_28, %c0_29] : memref<128x128xbf16, #tpu.memory_space<vmem>>, vector<128x128xbf16>
    %cst_30 = arith.constant dense<0.000000e+00> : vector<32x128xf32>
    %85 = tpu.matmul %83, %84, %cst_30 {dimension_numbers = #tpu.dot_dimension_numbers<[1], [0], [0], [1], [0, 0, 1, 1], [], []>} : vector<32x128xbf16>, vector<128x128xbf16>, vector<32x128xf32> -> vector<32x128xf32>
    %c4 = arith.constant 4 : index
    %c0_31 = arith.constant 0 : index
    %86 = vector.load %arg4[%c4, %c0_31] : memref<8x128xf32, #tpu.memory_space<vmem>>, vector<1x128xf32>
    %c5 = arith.constant 5 : index
    %c0_32 = arith.constant 0 : index
    %87 = vector.load %arg4[%c5, %c0_32] : memref<8x128xf32, #tpu.memory_space<vmem>>, vector<1x128xf32>
    %cst_33 = arith.constant dense<0.000000e+00> : vector<128xf32>
    %88 = vector.multi_reduction <add>, %85, %cst_33 [0] : vector<32x128xf32> to vector<128xf32>
    %89 = vector.shape_cast %88 : vector<128xf32> to vector<1x128xf32>
    %cst_34 = arith.constant 3.125000e-02 : f32
    %90 = vector.broadcast %cst_34 : f32 to vector<1x128xf32>
    %91 = arith.mulf %89, %90 : vector<1x128xf32>
    %92 = arith.mulf %85, %85 : vector<32x128xf32>
    %cst_35 = arith.constant dense<0.000000e+00> : vector<128xf32>
    %93 = vector.multi_reduction <add>, %92, %cst_35 [0] : vector<32x128xf32> to vector<128xf32>
    %94 = vector.shape_cast %93 : vector<128xf32> to vector<1x128xf32>
    %cst_36 = arith.constant 3.125000e-02 : f32
    %95 = vector.broadcast %cst_36 : f32 to vector<1x128xf32>
    %96 = arith.mulf %94, %95 : vector<1x128xf32>
    %97 = arith.mulf %91, %91 : vector<1x128xf32>
    %98 = arith.subf %96, %97 : vector<1x128xf32>
    %cst_37 = arith.constant 0.000000e+00 : f32
    %99 = vector.broadcast %cst_37 : f32 to vector<1x128xf32>
    %100 = arith.maximumf %98, %99 : vector<1x128xf32>
    %cst_38 = arith.constant 9.99999974E-6 : f32
    %101 = vector.broadcast %cst_38 : f32 to vector<1x128xf32>
    %102 = arith.addf %100, %101 : vector<1x128xf32>
    %103 = math.rsqrt %102 : vector<1x128xf32>
    %104 = arith.mulf %86, %103 : vector<1x128xf32>
    %105 = arith.mulf %91, %104 : vector<1x128xf32>
    %106 = arith.subf %87, %105 : vector<1x128xf32>
    %107 = vector.broadcast %104 : vector<1x128xf32> to vector<32x128xf32>
    %108 = arith.mulf %85, %107 : vector<32x128xf32>
    %109 = vector.broadcast %106 : vector<1x128xf32> to vector<32x128xf32>
    %110 = arith.addf %108, %109 : vector<32x128xf32>
    %111 = arith.addf %110, %0 : vector<32x128xf32>
    %cst_39 = arith.constant 0.000000e+00 : f32
    %112 = vector.broadcast %cst_39 : f32 to vector<32x128xf32>
    %113 = arith.maximumf %111, %112 : vector<32x128xf32>
    %c0_40 = arith.constant 0 : index
    %c0_41 = arith.constant 0 : index
    %114 = vector.load %arg5[%c0_40, %c0_41] : memref<32x128xf32, #tpu.memory_space<vmem>>, vector<32x128xf32>
    tpu.vector_store %arg5[%c0_40, %c0_41], %113 {strides = array<i32>} : memref<32x128xf32, #tpu.memory_space<vmem>>, vector<32x128xf32>,
    return
  }
}

</mosaic_0001>

<llo_original>
// kernel: resnet_block_forward.1
$region0: #{resnet_block_forward.1}
  #allocation0 [shape = 'u32[]', space=smem, size = 0x4, offset = 0x4, fixed_abs, tag = 'smem constant byte address 0x4 - core index']
  #allocation1 [shape = 'u32[144,128]{1,0:T(1,128)}', space=vmem, size = 0x12000, scoped, tag = 'internal scratch']
  %s0 = inlined_call_operand.vmem [shape: f32[32,128], index: 0, kind: input, shape index: {}]
  %s1 = inlined_call_operand.vmem [shape: bf16[128,128], index: 1, kind: input, shape index: {}]
  %s2 = inlined_call_operand.hbm [shape: bf16[128,384], index: 2, kind: input, shape index: {}]
  %s3 = inlined_call_operand.hbm [shape: bf16[128,128], index: 3, kind: input, shape index: {}]
  %s4 = inlined_call_operand.vmem [shape: f32[8,128], index: 4, kind: input, shape index: {}]
  %s5 = inlined_call_operand.hbm [shape: f32[32,128], index: 5, kind: output, shape index: {}]
  %s6 = sld [smem:[#allocation0]]
  $region38: #{resnet_block_forward.1} parent=0
    _
  %s8 = ssub.s32 1, %s6
  %s9 = scalar_select 0, %s8, %s6
  $region1: #{resnet_block_forward.1} parent=0
    #allocation2 [shape = 'u8[98304]{0}', space=vmem, size = 0x18000, scoped, tag = 'input window, operand 2, single buffered']
    #allocation3 [shape = 's32[1]{0}', space=sflag, size = 0x4, scoped, tag = 'scoped memory for resnet_block_forward.1']
    #allocation4 [shape = 's32[1]{0}', space=sflag, size = 0x4, scoped, tag = 'scoped memory for resnet_block_forward.1']
    #allocation5 [shape = 'u8[32768]{0}', space=vmem, size = 0x8000, scoped, tag = 'input window, operand 3, single buffered']
    #allocation6 [shape = 's32[1]{0}', space=sflag, size = 0x4, scoped, tag = 'scoped memory for resnet_block_forward.1']
    #allocation7 [shape = 'u8[16384]{0}', space=vmem, size = 0x4000, scoped, tag = 'output window, operand 0, single buffered']
    %10 = vsyncpa [#allocation3], 0
    %11 = vsyncpa [#allocation6], 0
    %12 = vsyncpa [#allocation4], 0
    // Predicated region
    $region2: #{resnet_block_forward.1} parent=1 // pred_check
      _
    $region3: #{resnet_block_forward.1} parent=1 // pred_check_branch
      %14 = sbr.rel (0) target = $region5
    $region4: #{resnet_block_forward.1} parent=1 // pred_region
      _
    $region5: #{resnet_block_forward.1} parent=1 // pred_fallthru
      _
    // Predicated region
    $region6: #{resnet_block_forward.1} parent=1 // pred_check
      _
    $region7: #{resnet_block_forward.1} parent=1 // pred_check_branch
      %16 = sbr.rel (0) target = $region9
    $region8: #{resnet_block_forward.1} parent=1 // pred_region
      _
    $region9: #{resnet_block_forward.1} parent=1 // pred_fallthru
      _
    // Predicated region
    $region10: #{resnet_block_forward.1} parent=1 // pred_check
      _
    $region11: #{resnet_block_forward.1} parent=1 // pred_check_branch
      %18 = sbr.rel (0) target = $region13
    $region12: #{resnet_block_forward.1} parent=1 // pred_region
      %s20 = ssub.s32 3072, 3072
      %21 = vsyncadd [#allocation3], %s20
      %s22 = sshll.u32 [#allocation2], 4
      %s23 = int_to_ptr.vmem [resolvable:$true] %s22
      %28 = dma.hbm_to_vmem [thread:$0]  %s2, 3072, %s23, [#allocation3], 192, 192, 12
    $region13: #{resnet_block_forward.1} parent=1 // pred_fallthru
      _
    // Predicated region
    $region14: #{resnet_block_forward.1} parent=1 // pred_check
      _
    $region15: #{resnet_block_forward.1} parent=1 // pred_check_branch
      %30 = sbr.rel (0) target = $region17
    $region16: #{resnet_block_forward.1} parent=1 // pred_region
      %s32 = ssub.s32 1024, 1024
      %33 = vsyncadd [#allocation6], %s32
      %s34 = sshll.u32 [#allocation5], 4
      %s35 = int_to_ptr.vmem [resolvable:$true] %s34
      %40 = dma.hbm_to_vmem [thread:$0]  %s3, 1024, %s35, [#allocation6], 64, 64, 4
    $region17: #{resnet_block_forward.1} parent=1 // pred_fallthru
      _
    // Predicated region
    $region18: #{resnet_block_forward.1} parent=1 // pred_check
      _
    $region19: #{resnet_block_forward.1} parent=1 // pred_check_branch
      %42 = sbr.rel (0) target = $region21
    $region20: #{resnet_block_forward.1} parent=1 // pred_region
      _
    $region21: #{resnet_block_forward.1} parent=1 // pred_fallthru
      _
    // Predicated region
    $region22: #{resnet_block_forward.1} parent=1 // pred_check
      _
    $region23: #{resnet_block_forward.1} parent=1 // pred_check_branch
      %44 = sbr.rel (0) target = $region25
    $region24: #{resnet_block_forward.1} parent=1 // pred_region
      %45 = dma.done [#allocation3], 3072
    $region25: #{resnet_block_forward.1} parent=1 // pred_fallthru
      _
    // Predicated region
    $region26: #{resnet_block_forward.1} parent=1 // pred_check
      _
    $region27: #{resnet_block_forward.1} parent=1 // pred_check_branch
      %47 = sbr.rel (0) target = $region29
    $region28: #{resnet_block_forward.1} parent=1 // pred_region
      %48 = dma.done [#allocation6], 1024
    $region29: #{resnet_block_forward.1} parent=1 // pred_fallthru
      _
    %v50 = vld [vmem:[%s0] sm:$0xff]
    %v51 = vld [vmem:[%s0 + $0x8] sm:$0xff]
    %v52 = vld [vmem:[%s0 + $0x10] sm:$0xff]
    %v53 = vld [vmem:[%s0 + $0x18] sm:$0xff]
    %v54 = vlaneseq
    %v55 = vshrl.u32 %v54, 7
    %v56 = vadd.s32 %v55, 8
    %v57 = vadd.s32 %v55, 16
    %v58 = vadd.s32 %v55, 24
    %v59 = vand.u32 %v55, 15
    %v60 = vand.u32 %v56, 15
    %v61 = vand.u32 %v57, 15
    %v62 = vand.u32 %v58, 15
    %vm63 = vcmp.ne.s32.totalorder %v59, 0
    %vm64 = vcmp.ne.s32.totalorder %v60, 0
    %vm65 = vcmp.ne.s32.totalorder %v61, 0
    %vm66 = vcmp.ne.s32.totalorder %v62, 0
    %vm67 = vcmp.ne.s32.totalorder %v59, 15
    %vm68 = vcmp.ne.s32.totalorder %v60, 15
    %vm69 = vcmp.ne.s32.totalorder %v61, 15
    %vm70 = vcmp.ne.s32.totalorder %v62, 15
    %v71 = vpack.c.bf16 %v51, %v50
    %v72 = vpack.c.bf16 %v53, %v52
    %v73 = vld [vmem:[%s1] sm:$0xf]
    %v74 = vld [vmem:[%s1 + $0x4] sm:$0xf]
    %v75 = vld [vmem:[%s1 + $0x8] sm:$0xf]
    %v76 = vld [vmem:[%s1 + $0xc] sm:$0xf]
    %v77 = vld [vmem:[%s1 + $0x10] sm:$0xf]
    %v78 = vld [vmem:[%s1 + $0x14] sm:$0xf]
    %v79 = vld [vmem:[%s1 + $0x18] sm:$0xf]
    %v80 = vld [vmem:[%s1 + $0x1c] sm:$0xf]
    %v81 = vld [vmem:[%s1 + $0x20] sm:$0xf]
    %v82 = vld [vmem:[%s1 + $0x24] sm:$0xf]
    %v83 = vld [vmem:[%s1 + $0x28] sm:$0xf]
    %v84 = vld [vmem:[%s1 + $0x2c] sm:$0xf]
    %v85 = vld [vmem:[%s1 + $0x30] sm:$0xf]
    %v86 = vld [vmem:[%s1 + $0x34] sm:$0xf]
    %v87 = vld [vmem:[%s1 + $0x38] sm:$0xf]
    %v88 = vld [vmem:[%s1 + $0x3c] sm:$0xf]
    %v105 = vunpack.c.l.b16 %v73
    %v106 = vunpack.c.l.b16 %v74
    %v107 = vunpack.c.l.b16 %v75
    %v108 = vunpack.c.l.b16 %v76
    %v109 = vunpack.c.l.b16 %v77
    %v110 = vunpack.c.l.b16 %v78
    %v111 = vunpack.c.l.b16 %v79
    %v112 = vunpack.c.l.b16 %v80
    %v113 = vunpack.c.l.b16 %v81
    %v114 = vunpack.c.l.b16 %v82
    %v115 = vunpack.c.l.b16 %v83
    %v116 = vunpack.c.l.b16 %v84
    %v117 = vunpack.c.l.b16 %v85
    %v118 = vunpack.c.l.b16 %v86
    %v119 = vunpack.c.l.b16 %v87
    %v120 = vunpack.c.l.b16 %v88
    %v121 = vpack.c.b16 %v106, %v105
    %v122 = vpack.c.b16 %v108, %v107
    %v123 = vpack.c.b16 %v110, %v109
    %v124 = vpack.c.b16 %v112, %v111
    %v125 = vpack.c.b16 %v114, %v113
    %v126 = vpack.c.b16 %v116, %v115
    %v127 = vpack.c.b16 %v118, %v117
    %v128 = vpack.c.b16 %v120, %v119
    %137 = vmatprep.subr.bf16.mxu0 0
    %138 = vmatpush1.bf16.msra.mxu0 %v128
    %139 = vmatprep.subr.bf16.mxu0 0
    %140 = vmatpush1.bf16.msra.mxu0 %v127
    %141 = vmatprep.subr.bf16.mxu0 0
    %142 = vmatpush1.bf16.msra.mxu0 %v126
    %143 = vmatprep.subr.bf16.mxu0 0
    %144 = vmatpush1.bf16.msra.mxu0 %v125
    %145 = vmatprep.subr.bf16.mxu0 0
    %146 = vmatpush1.bf16.msra.mxu0 %v124
    %147 = vmatprep.subr.bf16.mxu0 0
    %148 = vmatpush1.bf16.msra.mxu0 %v123
    %149 = vmatprep.subr.bf16.mxu0 0
    %150 = vmatpush1.bf16.msra.mxu0 %v122
    %151 = vmatprep.subr.bf16.mxu0 0
    %152 = vmatpush1.bf16.msra.mxu0 %v121
    %153 = vmatprep.subr.bf16.mxu0 0
    %154 = vmatpush2.bf16.msra.mxu0 0
    %155 = vmatprep.subr.bf16.mxu0 0
    %156 = vmatpush2.bf16.msra.mxu0 0
    %157 = vmatprep.subr.bf16.mxu0 0
    %158 = vmatpush2.bf16.msra.mxu0 0
    %159 = vmatprep.subr.bf16.mxu0 0
    %160 = vmatpush2.bf16.msra.mxu0 0
    %161 = vmatprep.subr.bf16.mxu0 0
    %162 = vmatpush2.bf16.msra.mxu0 0
    %163 = vmatprep.subr.bf16.mxu0 0
    %164 = vmatpush2.bf16.msra.mxu0 0
    %165 = vmatprep.subr.bf16.mxu0 0
    %166 = vmatpush2.bf16.msra.mxu0 0
    %167 = vmatprep.subr.bf16.mxu0 0
    %168 = vmatpush2.bf16.msra.mxu0 0
    %169 = vmatprep.mubr.bf16.mxu0 0
    %170 = vmatmul.mubr.bf16.gmra.mxu0 %v71
    %v171 = vpop.f32.mrf.mxu0
    %v172 = vadd.f32 0.0, %v171
    %v173 = vpop.f32.mrf.mxu0
    %v174 = vpop.f32.mrf.mxu0
    %v175 = vadd.f32 0.0, %v174
    %v176 = vpop.f32.mrf.mxu0
    %177 = vmatprep.mubr.bf16.mxu0 0
    %178 = vmatmul.mubr.bf16.gmra.mxu0 %v72
    %v179 = vpop.f32.mrf.mxu0
    %v180 = vadd.f32 0.0, %v179
    %v181 = vpop.f32.mrf.mxu0
    %v182 = vpop.f32.mrf.mxu0
    %v183 = vadd.f32 0.0, %v182
    %v184 = vpop.f32.mrf.mxu0
    %185 = vdwg.mxu0
    %v186 = vld [vmem:[%s4] sm:$0x1]
    %v187 = vld [vmem:[%s4 + $0x1] sm:$0x1]
    %v188 = vadd.f32 %v172, %v175
    %v189 = vadd.f32 %v188, %v180
    %v190 = vadd.f32 %v189, %v183
    %v191 = vrot.slane %v190, 4
    %v192 = vadd.f32 %v190, %v191
    %v193 = vrot.slane %v192, 2
    %v194 = vadd.f32 %v192, %v193
    %v195 = vrot.slane %v194, 1
    %v196 = vadd.f32 %v194, %v195
    %v197 = vmul.f32 %v196, 0.03125
    %v198 = vmul.f32 %v172, %v172
    %v199 = vmul.f32 %v175, %v175
    %v200 = vmul.f32 %v180, %v180
    %v201 = vmul.f32 %v183, %v183
    %v202 = vadd.f32 %v198, %v199
    %v203 = vadd.f32 %v202, %v200
    %v204 = vadd.f32 %v203, %v201
    %v205 = vrot.slane %v204, 4
    %v206 = vadd.f32 %v204, %v205
    %v207 = vrot.slane %v206, 2
    %v208 = vadd.f32 %v206, %v207
    %v209 = vrot.slane %v208, 1
    %v210 = vadd.f32 %v208, %v209
    %v211 = vmul.f32 %v210, 0.03125
    %v212 = vmul.f32 %v197, %v197
    %v213 = vsub.f32 %v211, %v212
    %v214 = vmax.f32 %v213, 0.0
    %v215 = vadd.f32 %v214, 1e-05
    %v216 = vrsqrt.pop %v215
    %v217 = vmul.f32 %v186, %v216
    %v218 = vmul.f32 %v197, %v217
    %v219 = vsub.f32 %v187, %v218
    %v220 = vlaneseq
    %v221 = vshrl.u32 %v220, 7
    %v222 = vsub.s32 0, %v221
    %v223 = vrot.slane %v217, %v222
    %v224 = vmul.f32 %v172, %v223
    %v225 = vmul.f32 %v175, %v223
    %v226 = vmul.f32 %v180, %v223
    %v227 = vmul.f32 %v183, %v223
    %v228 = vlaneseq
    %v229 = vshrl.u32 %v228, 7
    %v230 = vsub.s32 0, %v229
    %v231 = vrot.slane %v219, %v230
    %v232 = vadd.f32 %v224, %v231
    %v233 = vadd.f32 %v225, %v231
    %v234 = vadd.f32 %v226, %v231
    %v235 = vadd.f32 %v227, %v231
    %v236 = vmax.f32 %v232, 0.0
    %v237 = vmax.f32 %v233, 0.0
    %v238 = vmax.f32 %v234, 0.0
    %v239 = vmax.f32 %v235, 0.0
    %v240 = vpack.c.bf16 %v237, %v236
    %v241 = vpack.c.bf16 %v239, %v238
    %v242 = vld [vmem:[#allocation2] sm:$0xff]
    %v243 = vld [vmem:[#allocation2 + $0x8] sm:$0xf]
    %v244 = vld [vmem:[#allocation2 + $0xc] sm:$0xff]
    %v245 = vld [vmem:[#allocation2 + $0x14] sm:$0xf]
    %v246 = vld [vmem:[#allocation2 + $0x18] sm:$0xff]
    %v247 = vld [vmem:[#allocation2 + $0x20] sm:$0xf]
    %v248 = vld [vmem:[#allocation2 + $0x24] sm:$0xff]
    %v249 = vld [vmem:[#allocation2 + $0x2c] sm:$0xf]
    %v250 = vld [vmem:[#allocation2 + $0x30] sm:$0xff]
    %v251 = vld [vmem:[#allocation2 + $0x38] sm:$0xf]
    %v252 = vld [vmem:[#allocation2 + $0x3c] sm:$0xff]
    %v253 = vld [vmem:[#allocation2 + $0x44] sm:$0xf]
    %v254 = vld [vmem:[#allocation2 + $0x48] sm:$0xff]
    %v255 = vld [vmem:[#allocation2 + $0x50] sm:$0xf]
    %v256 = vld [vmem:[#allocation2 + $0x54] sm:$0xff]
    %v257 = vld [vmem:[#allocation2 + $0x5c] sm:$0xf]
    %v258 = vld [vmem:[#allocation2 + $0x60] sm:$0xff]
    %v259 = vld [vmem:[#allocation2 + $0x68] sm:$0xf]
    %v260 = vld [vmem:[#allocation2 + $0x6c] sm:$0xff]
    %v261 = vld [vmem:[#allocation2 + $0x74] sm:$0xf]
    %v262 = vld [vmem:[#allocation2 + $0x78] sm:$0xff]
    %v263 = vld [vmem:[#allocation2 + $0x80] sm:$0xf]
    %v264 = vld [vmem:[#allocation2 + $0x84] sm:$0xff]
    %v265 = vld [vmem:[#allocation2 + $0x8c] sm:$0xf]
    %v266 = vld [vmem:[#allocation2 + $0x90] sm:$0xff]
    %v267 = vld [vmem:[#allocation2 + $0x98] sm:$0xf]
    %v268 = vld [vmem:[#allocation2 + $0x9c] sm:$0xff]
    %v269 = vld [vmem:[#allocation2 + $0xa4] sm:$0xf]
    %v270 = vld [vmem:[#allocation2 + $0xa8] sm:$0xff]
    %v271 = vld [vmem:[#allocation2 + $0xb0] sm:$0xf]
    %v272 = vld [vmem:[#allocation2 + $0xb4] sm:$0xff]
    %v273 = vld [vmem:[#allocation2 + $0xbc] sm:$0xf]
    %v306 = vunpack.c.l.b16 %v242
    %v307 = vunpack.c.h.b16 %v242
    %v308 = vunpack.c.l.b16 %v243
    %v309 = vunpack.c.l.b16 %v244
    %v310 = vunpack.c.h.b16 %v244
    %v311 = vunpack.c.l.b16 %v245
    %v312 = vunpack.c.l.b16 %v246
    %v313 = vunpack.c.h.b16 %v246
    %v314 = vunpack.c.l.b16 %v247
    %v315 = vunpack.c.l.b16 %v248
    %v316 = vunpack.c.h.b16 %v248
    %v317 = vunpack.c.l.b16 %v249
    %v318 = vunpack.c.l.b16 %v250
    %v319 = vunpack.c.h.b16 %v250
    %v320 = vunpack.c.l.b16 %v251
    %v321 = vunpack.c.l.b16 %v252
    %v322 = vunpack.c.h.b16 %v252
    %v323 = vunpack.c.l.b16 %v253
    %v324 = vunpack.c.l.b16 %v254
    %v325 = vunpack.c.h.b16 %v254
    %v326 = vunpack.c.l.b16 %v255
    %v327 = vunpack.c.l.b16 %v256
    %v328 = vunpack.c.h.b16 %v256
    %v329 = vunpack.c.l.b16 %v257
    %v330 = vunpack.c.l.b16 %v258
    %v331 = vunpack.c.h.b16 %v258
    %v332 = vunpack.c.l.b16 %v259
    %v333 = vunpack.c.l.b16 %v260
    %v334 = vunpack.c.h.b16 %v260
    %v335 = vunpack.c.l.b16 %v261
    %v336 = vunpack.c.l.b16 %v262
    %v337 = vunpack.c.h.b16 %v262
    %v338 = vunpack.c.l.b16 %v263
    %v339 = vunpack.c.l.b16 %v264
    %v340 = vunpack.c.h.b16 %v264
    %v341 = vunpack.c.l.b16 %v265
    %v342 = vunpack.c.l.b16 %v266
    %v343 = vunpack.c.h.b16 %v266
    %v344 = vunpack.c.l.b16 %v267
    %v345 = vunpack.c.l.b16 %v268
    %v346 = vunpack.c.h.b16 %v268
    %v347 = vunpack.c.l.b16 %v269
    %v348 = vunpack.c.l.b16 %v270
    %v349 = vunpack.c.h.b16 %v270
    %v350 = vunpack.c.l.b16 %v271
    %v351 = vunpack.c.l.b16 %v272
    %v352 = vunpack.c.h.b16 %v272
    %v353 = vunpack.c.l.b16 %v273
    %v354 = vpack.c.b16 %v309, %v306
    %v355 = vpack.c.b16 %v310, %v307
    %v356 = vpack.c.b16 %v311, %v308
    %v357 = vpack.c.b16 %v315, %v312
    %v358 = vpack.c.b16 %v316, %v313
    %v359 = vpack.c.b16 %v317, %v314
    %v360 = vpack.c.b16 %v321, %v318
    %v361 = vpack.c.b16 %v322, %v319
    %v362 = vpack.c.b16 %v323, %v320
    %v363 = vpack.c.b16 %v327, %v324
    %v364 = vpack.c.b16 %v328, %v325
    %v365 = vpack.c.b16 %v329, %v326
    %v366 = vpack.c.b16 %v333, %v330
    %v367 = vpack.c.b16 %v334, %v331
    %v368 = vpack.c.b16 %v335, %v332
    %v369 = vpack.c.b16 %v339, %v336
    %v370 = vpack.c.b16 %v340, %v337
    %v371 = vpack.c.b16 %v341, %v338
    %v372 = vpack.c.b16 %v345, %v342
    %v373 = vpack.c.b16 %v346, %v343
    %v374 = vpack.c.b16 %v347, %v344
    %v375 = vpack.c.b16 %v351, %v348
    %v376 = vpack.c.b16 %v352, %v349
    %v377 = vpack.c.b16 %v353, %v350
    %402 = vmatprep.subr.bf16.mxu0 %v376
    %403 = vmatpush1.bf16.msra.mxu0 %v375
    %404 = vmatprep.subr.bf16.mxu0 %v373
    %405 = vmatpush1.bf16.msra.mxu0 %v372
    %406 = vmatprep.subr.bf16.mxu0 %v370
    %407 = vmatpush1.bf16.msra.mxu0 %v369
    %408 = vmatprep.subr.bf16.mxu0 %v367
    %409 = vmatpush1.bf16.msra.mxu0 %v366
    %410 = vmatprep.subr.bf16.mxu0 %v364
    %411 = vmatpush1.bf16.msra.mxu0 %v363
    %412 = vmatprep.subr.bf16.mxu0 %v361
    %413 = vmatpush1.bf16.msra.mxu0 %v360
    %414 = vmatprep.subr.bf16.mxu0 %v358
    %415 = vmatpush1.bf16.msra.mxu0 %v357
    %416 = vmatprep.subr.bf16.mxu0 %v355
    %417 = vmatpush1.bf16.msra.mxu0 %v354
    %418 = vmatprep.subr.bf16.mxu0 0
    %419 = vmatpush2.bf16.msra.mxu0 0
    %420 = vmatprep.subr.bf16.mxu0 0
    %421 = vmatpush2.bf16.msra.mxu0 0
    %422 = vmatprep.subr.bf16.mxu0 0
    %423 = vmatpush2.bf16.msra.mxu0 0
    %424 = vmatprep.subr.bf16.mxu0 0
    %425 = vmatpush2.bf16.msra.mxu0 0
    %426 = vmatprep.subr.bf16.mxu0 0
    %427 = vmatpush2.bf16.msra.mxu0 0
    %428 = vmatprep.subr.bf16.mxu0 0
    %429 = vmatpush2.bf16.msra.mxu0 0
    %430 = vmatprep.subr.bf16.mxu0 0
    %431 = vmatpush2.bf16.msra.mxu0 0
    %432 = vmatprep.subr.bf16.mxu0 0
    %433 = vmatpush2.bf16.msra.mxu0 0
    %434 = vmatprep.mubr.bf16.mxu0 0
    %435 = vmatmul.mubr.bf16.gmra.mxu0 %v240
    %v436 = vpop.f32.mrf.mxu0
    %v437 = vadd.f32 0.0, %v436
    %v438 = vpop.f32.mrf.mxu0
    %v439 = vadd.f32 0.0, %v438
    %v440 = vpop.f32.mrf.mxu0
    %v441 = vadd.f32 0.0, %v440
    %v442 = vpop.f32.mrf.mxu0
    %v443 = vadd.f32 0.0, %v442
    %444 = vmatprep.mubr.bf16.mxu0 0
    %445 = vmatmul.mubr.bf16.gmra.mxu0 %v241
    %v446 = vpop.f32.mrf.mxu0
    %v447 = vadd.f32 0.0, %v446
    %v448 = vpop.f32.mrf.mxu0
    %v449 = vadd.f32 0.0, %v448
    %v450 = vpop.f32.mrf.mxu0
    %v451 = vadd.f32 0.0, %v450
    %v452 = vpop.f32.mrf.mxu0
    %v453 = vadd.f32 0.0, %v452
    %454 = vdwg.mxu0
    %455 = vmatprep.subr.bf16.mxu0 0
    %456 = vmatpush1.bf16.msra.mxu0 %v377
    %457 = vmatprep.subr.bf16.mxu0 0
    %458 = vmatpush1.bf16.msra.mxu0 %v374
    %459 = vmatprep.subr.bf16.mxu0 0
    %460 = vmatpush1.bf16.msra.mxu0 %v371
    %461 = vmatprep.subr.bf16.mxu0 0
    %462 = vmatpush1.bf16.msra.mxu0 %v368
    %463 = vmatprep.subr.bf16.mxu0 0
    %464 = vmatpush1.bf16.msra.mxu0 %v365
    %465 = vmatprep.subr.bf16.mxu0 0
    %466 = vmatpush1.bf16.msra.mxu0 %v362
    %467 = vmatprep.subr.bf16.mxu0 0
    %468 = vmatpush1.bf16.msra.mxu0 %v359
    %469 = vmatprep.subr.bf16.mxu0 0
    %470 = vmatpush1.bf16.msra.mxu0 %v356
    %471 = vmatprep.subr.bf16.mxu0 0
    %472 = vmatpush2.bf16.msra.mxu0 0
    %473 = vmatprep.subr.bf16.mxu0 0
    %474 = vmatpush2.bf16.msra.mxu0 0
    %475 = vmatprep.subr.bf16.mxu0 0
    %476 = vmatpush2.bf16.msra.mxu0 0
    %477 = vmatprep.subr.bf16.mxu0 0
    %478 = vmatpush2.bf16.msra.mxu0 0
    %479 = vmatprep.subr.bf16.mxu0 0
    %480 = vmatpush2.bf16.msra.mxu0 0
    %481 = vmatprep.subr.bf16.mxu0 0
    %482 = vmatpush2.bf16.msra.mxu0 0
    %483 = vmatprep.subr.bf16.mxu0 0
    %484 = vmatpush2.bf16.msra.mxu0 0
    %485 = vmatprep.subr.bf16.mxu0 0
    %486 = vmatpush2.bf16.msra.mxu0 0
    %487 = vmatprep.mubr.bf16.mxu0 0
    %488 = vmatmul.mubr.bf16.gmra.mxu0 %v240
    %v489 = vpop.f32.mrf.mxu0
    %v490 = vadd.f32 0.0, %v489
    %v491 = vpop.f32.mrf.mxu0
    %v492 = vpop.f32.mrf.mxu0
    %v493 = vadd.f32 0.0, %v492
    %v494 = vpop.f32.mrf.mxu0
    %495 = vmatprep.mubr.bf16.mxu0 0
    %496 = vmatmul.mubr.bf16.gmra.mxu0 %v241
    %v497 = vpop.f32.mrf.mxu0
    %v498 = vadd.f32 0.0, %v497
    %v499 = vpop.f32.mrf.mxu0
    %v500 = vpop.f32.mrf.mxu0
    %v501 = vadd.f32 0.0, %v500
    %v502 = vpop.f32.mrf.mxu0
    %503 = vdwg.mxu0
    %v504 = vrot.slane %v437, 7
    %v505 = vrot.slane %v441, 7
    %v506 = vrot.slane %v447, 7
    %v507 = vrot.slane %v451, 7
    %vm508 = vcmp.lt.s32.totalorder %v55, 1
    %v509 = vsel %vm508, %v506, %v507
    %v510 = vsel %vm508, %v505, %v506
    %v511 = vsel %vm508, %v504, %v505
    %v512 = vsel %vm508, %v507, %v504
    %v513 = vsel %vm63, 1, 0
    %v514 = vsel %vm64, 1, 0
    %v515 = vsel %vm65, 1, 0
    %v516 = vsel %vm66, 1, 0
    %vm517 = vcmp.eq.s32.totalorder %v513, 1
    %vm518 = vcmp.eq.s32.totalorder %v514, 1
    %vm519 = vcmp.eq.s32.totalorder %v515, 1
    %vm520 = vcmp.eq.s32.totalorder %v516, 1
    %v521 = vsel %vm517, %v512, 0.0
    %v522 = vsel %vm518, %v511, 0.0
    %v523 = vsel %vm519, %v510, 0.0
    %v524 = vsel %vm520, %v509, 0.0
    %v525 = vrot.slane %v490, 1
    %v526 = vrot.slane %v493, 1
    %v527 = vrot.slane %v498, 1
    %v528 = vrot.slane %v501, 1
    %vm529 = vcmp.lt.s32.totalorder %v55, 7
    %v530 = vsel %vm529, %v527, %v528
    %v531 = vsel %vm529, %v526, %v527
    %v532 = vsel %vm529, %v525, %v526
    %v533 = vsel %vm529, %v528, %v525
    %v534 = vsel %vm67, 1, 0
    %v535 = vsel %vm68, 1, 0
    %v536 = vsel %vm69, 1, 0
    %v537 = vsel %vm70, 1, 0
    %vm538 = vcmp.eq.s32.totalorder %v534, 1
    %vm539 = vcmp.eq.s32.totalorder %v535, 1
    %vm540 = vcmp.eq.s32.totalorder %v536, 1
    %vm541 = vcmp.eq.s32.totalorder %v537, 1
    %v542 = vsel %vm538, %v532, 0.0
    %v543 = vsel %vm539, %v531, 0.0
    %v544 = vsel %vm540, %v530, 0.0
    %v545 = vsel %vm541, %v533, 0.0
    %v546 = vadd.f32 %v521, %v439
    %v547 = vadd.f32 %v522, %v443
    %v548 = vadd.f32 %v523, %v449
    %v549 = vadd.f32 %v524, %v453
    %v550 = vadd.f32 %v546, %v542
    %v551 = vadd.f32 %v547, %v543
    %v552 = vadd.f32 %v548, %v544
    %v553 = vadd.f32 %v549, %v545
    %v554 = vld [vmem:[%s4 + $0x2] sm:$0x1]
    %v555 = vld [vmem:[%s4 + $0x3] sm:$0x1]
    %v556 = vadd.f32 %v550, %v551
    %v557 = vadd.f32 %v556, %v552
    %v558 = vadd.f32 %v557, %v553
    %v559 = vrot.slane %v558, 4
    %v560 = vadd.f32 %v558, %v559
    %v561 = vrot.slane %v560, 2
    %v562 = vadd.f32 %v560, %v561
    %v563 = vrot.slane %v562, 1
    %v564 = vadd.f32 %v562, %v563
    %v565 = vmul.f32 %v564, 0.03125
    %v566 = vmul.f32 %v550, %v550
    %v567 = vmul.f32 %v551, %v551
    %v568 = vmul.f32 %v552, %v552
    %v569 = vmul.f32 %v553, %v553
    %v570 = vadd.f32 %v566, %v567
    %v571 = vadd.f32 %v570, %v568
    %v572 = vadd.f32 %v571, %v569
    %v573 = vrot.slane %v572, 4
    %v574 = vadd.f32 %v572, %v573
    %v575 = vrot.slane %v574, 2
    %v576 = vadd.f32 %v574, %v575
    %v577 = vrot.slane %v576, 1
    %v578 = vadd.f32 %v576, %v577
    %v579 = vmul.f32 %v578, 0.03125
    %v580 = vmul.f32 %v565, %v565
    %v581 = vsub.f32 %v579, %v580
    %v582 = vmax.f32 %v581, 0.0
    %v583 = vadd.f32 %v582, 1e-05
    %v584 = vrsqrt.pop %v583
    %v585 = vmul.f32 %v554, %v584
    %v586 = vmul.f32 %v565, %v585
    %v587 = vsub.f32 %v555, %v586
    %v588 = vlaneseq
    %v589 = vshrl.u32 %v588, 7
    %v590 = vsub.s32 0, %v589
    %v591 = vrot.slane %v585, %v590
    %v592 = vmul.f32 %v550, %v591
    %v593 = vmul.f32 %v551, %v591
    %v594 = vmul.f32 %v552, %v591
    %v595 = vmul.f32 %v553, %v591
    %v596 = vlaneseq
    %v597 = vshrl.u32 %v596, 7
    %v598 = vsub.s32 0, %v597
    %v599 = vrot.slane %v587, %v598
    %v600 = vadd.f32 %v592, %v599
    %v601 = vadd.f32 %v593, %v599
    %v602 = vadd.f32 %v594, %v599
    %v603 = vadd.f32 %v595, %v599
    %v604 = vmax.f32 %v600, 0.0
    %v605 = vmax.f32 %v601, 0.0
    %v606 = vmax.f32 %v602, 0.0
    %v607 = vmax.f32 %v603, 0.0
    %v608 = vpack.c.bf16 %v605, %v604
    %v609 = vpack.c.bf16 %v607, %v606
    %v610 = vld [vmem:[#allocation5] sm:$0xf]
    %v611 = vld [vmem:[#allocation5 + $0x4] sm:$0xf]
    %v612 = vld [vmem:[#allocation5 + $0x8] sm:$0xf]
    %v613 = vld [vmem:[#allocation5 + $0xc] sm:$0xf]
    %v614 = vld [vmem:[#allocation5 + $0x10] sm:$0xf]
    %v615 = vld [vmem:[#allocation5 + $0x14] sm:$0xf]
    %v616 = vld [vmem:[#allocation5 + $0x18] sm:$0xf]
    %v617 = vld [vmem:[#allocation5 + $0x1c] sm:$0xf]
    %v618 = vld [vmem:[#allocation5 + $0x20] sm:$0xf]
    %v619 = vld [vmem:[#allocation5 + $0x24] sm:$0xf]
    %v620 = vld [vmem:[#allocation5 + $0x28] sm:$0xf]
    %v621 = vld [vmem:[#allocation5 + $0x2c] sm:$0xf]
    %v622 = vld [vmem:[#allocation5 + $0x30] sm:$0xf]
    %v623 = vld [vmem:[#allocation5 + $0x34] sm:$0xf]
    %v624 = vld [vmem:[#allocation5 + $0x38] sm:$0xf]
    %v625 = vld [vmem:[#allocation5 + $0x3c] sm:$0xf]
    %v642 = vunpack.c.l.b16 %v610
    %v643 = vunpack.c.l.b16 %v611
    %v644 = vunpack.c.l.b16 %v612
    %v645 = vunpack.c.l.b16 %v613
    %v646 = vunpack.c.l.b16 %v614
    %v647 = vunpack.c.l.b16 %v615
    %v648 = vunpack.c.l.b16 %v616
    %v649 = vunpack.c.l.b16 %v617
    %v650 = vunpack.c.l.b16 %v618
    %v651 = vunpack.c.l.b16 %v619
    %v652 = vunpack.c.l.b16 %v620
    %v653 = vunpack.c.l.b16 %v621
    %v654 = vunpack.c.l.b16 %v622
    %v655 = vunpack.c.l.b16 %v623
    %v656 = vunpack.c.l.b16 %v624
    %v657 = vunpack.c.l.b16 %v625
    %v658 = vpack.c.b16 %v643, %v642
    %v659 = vpack.c.b16 %v645, %v644
    %v660 = vpack.c.b16 %v647, %v646
    %v661 = vpack.c.b16 %v649, %v648
    %v662 = vpack.c.b16 %v651, %v650
    %v663 = vpack.c.b16 %v653, %v652
    %v664 = vpack.c.b16 %v655, %v654
    %v665 = vpack.c.b16 %v657, %v656
    %674 = vmatprep.subr.bf16.mxu0 0
    %675 = vmatpush1.bf16.msra.mxu0 %v665
    %676 = vmatprep.subr.bf16.mxu0 0
    %677 = vmatpush1.bf16.msra.mxu0 %v664
    %678 = vmatprep.subr.bf16.mxu0 0
    %679 = vmatpush1.bf16.msra.mxu0 %v663
    %680 = vmatprep.subr.bf16.mxu0 0
    %681 = vmatpush1.bf16.msra.mxu0 %v662
    %682 = vmatprep.subr.bf16.mxu0 0
    %683 = vmatpush1.bf16.msra.mxu0 %v661
    %684 = vmatprep.subr.bf16.mxu0 0
    %685 = vmatpush1.bf16.msra.mxu0 %v660
    %686 = vmatprep.subr.bf16.mxu0 0
    %687 = vmatpush1.bf16.msra.mxu0 %v659
    %688 = vmatprep.subr.bf16.mxu0 0
    %689 = vmatpush1.bf16.msra.mxu0 %v658
    %690 = vmatprep.subr.bf16.mxu0 0
    %691 = vmatpush2.bf16.msra.mxu0 0
    %692 = vmatprep.subr.bf16.mxu0 0
    %693 = vmatpush2.bf16.msra.mxu0 0
    %694 = vmatprep.subr.bf16.mxu0 0
    %695 = vmatpush2.bf16.msra.mxu0 0
    %696 = vmatprep.subr.bf16.mxu0 0
    %697 = vmatpush2.bf16.msra.mxu0 0
    %698 = vmatprep.subr.bf16.mxu0 0
    %699 = vmatpush2.bf16.msra.mxu0 0
    %700 = vmatprep.subr.bf16.mxu0 0
    %701 = vmatpush2.bf16.msra.mxu0 0
    %702 = vmatprep.subr.bf16.mxu0 0
    %703 = vmatpush2.bf16.msra.mxu0 0
    %704 = vmatprep.subr.bf16.mxu0 0
    %705 = vmatpush2.bf16.msra.mxu0 0
    %706 = vmatprep.mubr.bf16.mxu0 0
    %707 = vmatmul.mubr.bf16.gmra.mxu0 %v608
    %v708 = vpop.f32.mrf.mxu0
    %v709 = vadd.f32 0.0, %v708
    %v710 = vpop.f32.mrf.mxu0
    %v711 = vpop.f32.mrf.mxu0
    %v712 = vadd.f32 0.0, %v711
    %v713 = vpop.f32.mrf.mxu0
    %714 = vmatprep.mubr.bf16.mxu0 0
    %715 = vmatmul.mubr.bf16.gmra.mxu0 %v609
    %v716 = vpop.f32.mrf.mxu0
    %v717 = vadd.f32 0.0, %v716
    %v718 = vpop.f32.mrf.mxu0
    %v719 = vpop.f32.mrf.mxu0
    %v720 = vadd.f32 0.0, %v719
    %v721 = vpop.f32.mrf.mxu0
    %722 = vdwg.mxu0
    %v723 = vld [vmem:[%s4 + $0x4] sm:$0x1]
    %v724 = vld [vmem:[%s4 + $0x5] sm:$0x1]
    %v725 = vadd.f32 %v709, %v712
    %v726 = vadd.f32 %v725, %v717
    %v727 = vadd.f32 %v726, %v720
    %v728 = vrot.slane %v727, 4
    %v729 = vadd.f32 %v727, %v728
    %v730 = vrot.slane %v729, 2
    %v731 = vadd.f32 %v729, %v730
    %v732 = vrot.slane %v731, 1
    %v733 = vadd.f32 %v731, %v732
    %v734 = vmul.f32 %v733, 0.03125
    %v735 = vmul.f32 %v709, %v709
    %v736 = vmul.f32 %v712, %v712
    %v737 = vmul.f32 %v717, %v717
    %v738 = vmul.f32 %v720, %v720
    %v739 = vadd.f32 %v735, %v736
    %v740 = vadd.f32 %v739, %v737
    %v741 = vadd.f32 %v740, %v738
    %v742 = vrot.slane %v741, 4
    %v743 = vadd.f32 %v741, %v742
    %v744 = vrot.slane %v743, 2
    %v745 = vadd.f32 %v743, %v744
    %v746 = vrot.slane %v745, 1
    %v747 = vadd.f32 %v745, %v746
    %v748 = vmul.f32 %v747, 0.03125
    %v749 = vmul.f32 %v734, %v734
    %v750 = vsub.f32 %v748, %v749
    %v751 = vmax.f32 %v750, 0.0
    %v752 = vadd.f32 %v751, 1e-05
    %v753 = vrsqrt.pop %v752
    %v754 = vmul.f32 %v723, %v753
    %v755 = vmul.f32 %v734, %v754
    %v756 = vsub.f32 %v724, %v755
    %v757 = vlaneseq
    %v758 = vshrl.u32 %v757, 7
    %v759 = vsub.s32 0, %v758
    %v760 = vrot.slane %v754, %v759
    %v761 = vmul.f32 %v709, %v760
    %v762 = vmul.f32 %v712, %v760
    %v763 = vmul.f32 %v717, %v760
    %v764 = vmul.f32 %v720, %v760
    %v765 = vlaneseq
    %v766 = vshrl.u32 %v765, 7
    %v767 = vsub.s32 0, %v766
    %v768 = vrot.slane %v756, %v767
    %v769 = vadd.f32 %v761, %v768
    %v770 = vadd.f32 %v762, %v768
    %v771 = vadd.f32 %v763, %v768
    %v772 = vadd.f32 %v764, %v768
    %v773 = vadd.f32 %v769, %v50
    %v774 = vadd.f32 %v770, %v51
    %v775 = vadd.f32 %v771, %v52
    %v776 = vadd.f32 %v772, %v53
    %v777 = vmax.f32 %v773, 0.0
    %v778 = vmax.f32 %v774, 0.0
    %v779 = vmax.f32 %v775, 0.0
    %v780 = vmax.f32 %v776, 0.0
    %781 = vst [vmem:[#allocation7] sm:$0xff] %v777
    %782 = vst [vmem:[#allocation7 + $0x8] sm:$0xff] %v778
    %783 = vst [vmem:[#allocation7 + $0x10] sm:$0xff] %v779
    %784 = vst [vmem:[#allocation7 + $0x18] sm:$0xff] %v780
    // Predicated region
    $region30: #{resnet_block_forward.1} parent=1 // pred_check
      _
    $region31: #{resnet_block_forward.1} parent=1 // pred_check_branch
      %786 = sbr.rel (0) target = $region33
    $region32: #{resnet_block_forward.1} parent=1 // pred_region
      %s788 = ssub.s32 512, 512
      %789 = vsyncadd [#allocation4], %s788
      %s790 = sshll.u32 [#allocation7], 4
      %s791 = int_to_ptr.vmem [resolvable:$true] %s790
      %796 = dma.vmem_to_hbm [thread:$0]  %s791, 512, %s5, [#allocation4], 128, 128, 8
    $region33: #{resnet_block_forward.1} parent=1 // pred_fallthru
      _
    // Predicated region
    $region34: #{resnet_block_forward.1} parent=1 // pred_check
      _
    $region35: #{resnet_block_forward.1} parent=1 // pred_check_branch
      %798 = sbr.rel (0) target = $region37
    $region36: #{resnet_block_forward.1} parent=1 // pred_region
      %799 = dma.done [#allocation4], 512
    $region37: #{resnet_block_forward.1} parent=1 // pred_fallthru
      _
    %800 = vsyncpa [#allocation3], 1
    %801 = vsyncpa [#allocation6], 1
    %802 = vsyncpa [#allocation4], 1

</llo_original>
